<compile_context>
chip_gen: v6e
topology: v6e:2x2x1
jax: 0.10.0
libtpu: 0.0.40
codegen_flags: <defaults>
</compile_context>

<pallas_src>
import numpy as np
import jax
import jax.numpy as jnp
from jax import lax
from jax.experimental import pallas as pl
from jax.experimental.pallas import tpu as pltpu


def _make_lat_weights(height, bottom=-90.0, top=90.0):
    """Deterministic replica of LatitudeLoss.set_task_type().

    Uses linspace(endpoint=False) instead of arange(step) so the result is
    guaranteed to have exactly `height` elements (arange can give H+-1 due to
    FP rounding of the step).  Last-ULP divergence from torch is accepted.
    """
    lat = np.linspace(bottom, top, height, endpoint=False, dtype=np.float64)
    w = np.cos(lat * np.pi / 180.0)
    w = height * w / np.sum(w)
    return jnp.asarray(w, dtype=jnp.float32)  # shape (H,)


def _cdiv(a, b):
    return (a + b - 1) // b


def _round_up(x, m):
    return ((x + m - 1) // m) * m


def _vmem_capacity_bytes():
    """Trace-time VMEM query; 0 on failure (=> conservative v7x-sized budget)."""
    try:
        info = pltpu.get_tpu_info()
        cap = getattr(info, "vmem_capacity_bytes", None)
        if cap:
            return int(cap)
    except Exception:
        pass
    return 0


def _make_kernel(TR, TC, M, N, n_sub, need_row_mask, need_col_mask):
    """Kernel body closed over the static tiling parameters."""
    n_slabs = TR // 8

    def kernel(o_ref, t_ref, w_ref, acc_ref):
        # o_ref/t_ref: (TR, TC) lane-dense input tiles (possibly ragged).
        # w_ref:       (1, TC)  latitude-weight plane slice for this col tile.
        # acc_ref:     (1, 1, 8, 128) resident accumulator per (row tile, supertile).
        i = pl.program_id(0)          # row tile           (parallel)
        p = pl.program_id(1)          # column supertile   (parallel)
        j = pl.program_id(2)          # column subtile     (reduction)

        @pl.when(j == 0)
        def _init():
            acc_ref[...] = jnp.zeros_like(acc_ref)

        row0 = i * TR

        def absdiff(o_slab, t_slab, row_base):
            # |o - t| on an (8, TC) sublane slab, f32, with row-tail masking.
            d = jnp.abs(o_slab.astype(jnp.float32) - t_slab.astype(jnp.float32))
            if need_row_mask:
                rows = row_base + lax.broadcasted_iota(jnp.int32, (8, 1), 0)
                d = jnp.where(rows < M, d, 0.0)
            return d

        if n_slabs == 1:
            rsum = absdiff(o_ref[...], t_ref[...], row0)
        else:
            # Row fold in (8, TC) slabs: pure VALU adds, no full-tile f32 temp.
            def body(s, acc):
                r = pl.multiple_of(s * 8, 8)
                return acc + absdiff(o_ref[pl.ds(r, 8), :],
                                     t_ref[pl.ds(r, 8), :],
                                     row0 + s * 8)

            rsum = lax.fori_loop(0, n_slabs, body,
                                 jnp.zeros((8, TC), jnp.float32))

        # Latitude weight depends only on the column, so it commutes past the
        # row fold: applied once to the folded row-sums, not per element.
        wsum = rsum * w_ref[...]

        if need_col_mask:
            # Mask AFTER the weight multiply so unspecified garbage (even NaN)
            # in the ragged tails of the inputs or weight plane never leaks in.
            c = p * n_sub + j
            cols = c * TC + lax.broadcasted_iota(jnp.int32, (1, TC), 1)
            wsum = jnp.where(cols < N, wsum, 0.0)

        # Lane-aligned halving fold down to one (8, 128) vreg: pure VALU adds,
        # keeps the HBM output tiny even when TC is very large.
        width = TC
        while width > 128:
            width //= 2
            wsum = wsum[:, :width] + wsum[:, width:]

        acc_ref[...] = acc_ref[...] + wsum[None, None, :, :]

    return kernel


def latitude_loss(output, target, weights_lat):
    """output, target: (B, C, H, W). weights_lat: (H,). Returns scalar f32."""
    B, C, H, W = output.shape
    M, N = B * C, H * W
    count = M * N
    o_isz = jnp.dtype(output.dtype).itemsize
    t_isz = jnp.dtype(target.dtype).itemsize

    # Lane-dense flatten: (B, C, H, W) -> (B*C, H*W). Row-major => free reshape.
    o2 = output.reshape(M, N)
    t2 = target.reshape(M, N)
    # Latitude weight expanded to a tiny (1, H*W) plane.
    w_plane = jnp.broadcast_to(
        weights_lat.astype(jnp.float32).reshape(H, 1), (H, W)
    ).reshape(1, N)

    # ---- generation-aware tile sizing --------------------------------------
    vmem_cap = _vmem_capacity_bytes()
    if vmem_cap >= 100 * 1024 * 1024:            # v5e / v6e (128 MiB VMEM)
        buf_bytes = 8 * 1024 * 1024              # per input buffer
        tc_max = 262144                          # bounds in-kernel f32 temps
        vmem_limit = 96 * 1024 * 1024
    else:                                        # v7x (64 MiB) or unknown
        buf_bytes = 4 * 1024 * 1024
        tc_max = 131072
        vmem_limit = 48 * 1024 * 1024

    # Row tile: balance rows over tiles (avoids a mostly-wasted tail tile).
    nrt = _cdiv(M, 256)
    TR = _round_up(_cdiv(M, nrt), 8)             # multiple of 8, <= 256
    nrt = _cdiv(M, TR)

    # Column tile: power-of-two multiple of 128, sized so one input buffer is
    # ~buf_bytes (=> ~8-16 MiB of input bytes per grid step when M is small).
    tc_cap = max(buf_bytes // (TR * o_isz), 128)
    tc_cover = 128
    while tc_cover < N:
        tc_cover *= 2
    TC = 128
    while TC * 2 <= min(tc_cap, tc_max, tc_cover):
        TC *= 2

    nct = _cdiv(N, TC)
    # Column supertiles: second "parallel" axis so both v7x TensorCores have
    # work even when nrt == 1.  Only used when it splits evenly (no duplicate
    # tail-tile DMA on single-core parts).
    n_super = 2 if (nct >= 2 and nct % 2 == 0) else 1
    n_sub = nct // n_super

    need_row_mask = (M % TR) != 0
    need_col_mask = (nct * TC) != N

    kernel = _make_kernel(TR, TC, M, N, n_sub, need_row_mask, need_col_mask)

    steps = nrt * n_super * n_sub
    cost = pl.CostEstimate(
        flops=4 * M * N,
        transcendentals=0,
        bytes_accessed=int(M * N * (o_isz + t_isz)       # both inputs
                           + steps * TC * 4              # weight re-fetches
                           + nrt * n_super * 8 * 128 * 4),
    )

    partials = pl.pallas_call(
        kernel,
        out_shape=jax.ShapeDtypeStruct((nrt, n_super, 8, 128), jnp.float32),
        grid=(nrt, n_super, n_sub),
        in_specs=[
            pl.BlockSpec((TR, TC), lambda i, p, j: (i, p * n_sub + j)),
            pl.BlockSpec((TR, TC), lambda i, p, j: (i, p * n_sub + j)),
            pl.BlockSpec((1, TC), lambda i, p, j: (0, p * n_sub + j)),
        ],
        out_specs=pl.BlockSpec((1, 1, 8, 128), lambda i, p, j: (i, p, 0, 0)),
        compiler_params=pltpu.CompilerParams(
            dimension_semantics=("parallel", "parallel", "arbitrary"),
            vmem_limit_bytes=vmem_limit,
        ),
        cost_estimate=cost,
    )(o2, t2, w_plane)

    # Tiny final reduce + mean scaling in the wrapper (pairwise-style accuracy,
    # keeps the parallel grid axes free of a shared accumulator).
    return jnp.sum(partials) / count


def latitude_loss_ref(output, target, weights_lat):
    """Pure-JAX reference matching the PyTorch forward."""
    diff = jnp.abs(output.astype(jnp.float32) - target.astype(jnp.float32))
    weighted = diff * weights_lat.reshape(1, 1, -1, 1)
    return jnp.mean(weighted)


if __name__ == "__main__":
    key = jax.random.PRNGKey(0)

    # Test 1: small aligned shape (no masking path).
    B, C, H, W = 2, 4, 16, 16
    k1, k2, k3, k4 = jax.random.split(key, 4)
    output = jax.random.normal(k1, (B, C, H, W), dtype=jnp.float32)
    target = jax.random.normal(k2, (B, C, H, W), dtype=jnp.float32)
    weights_lat = _make_lat_weights(H)

    loss = latitude_loss(output, target, weights_lat)
    jax.block_until_ready(loss)
    ref = latitude_loss_ref(output, target, weights_lat)
    assert jnp.allclose(loss, ref, rtol=2e-5, atol=1e-6), (loss, ref)

    # Test 2: misaligned rows/cols + bf16 inputs (exercises in-kernel masking
    # and the in-kernel f32 cast; no jnp.pad anywhere).
    B2, C2, H2, W2 = 1, 5, 18, 20
    output2 = jax.random.normal(k3, (B2, C2, H2, W2), dtype=jnp.bfloat16)
    target2 = jax.random.normal(k4, (B2, C2, H2, W2), dtype=jnp.bfloat16)
    weights_lat2 = _make_lat_weights(H2)

    loss2 = latitude_loss(output2, target2, weights_lat2)
    jax.block_until_ready(loss2)
    ref2 = latitude_loss_ref(output2, target2, weights_lat2)
    assert jnp.allclose(loss2, ref2, rtol=2e-5, atol=1e-6), (loss2, ref2)

    print("KERNEL_OK")
</pallas_src>

<mosaic_0001>
module attributes {stable_mosaic.version = 11 : i64} {
  func.func @kernel(%arg0: i32, %arg1: i32, %arg2: i32, %arg3: memref<8x256xf32, #tpu.memory_space<vmem>>, %arg4: memref<8x256xf32, #tpu.memory_space<vmem>>, %arg5: memref<1x256xf32, #tpu.memory_space<vmem>>, %arg6: memref<1x1x8x128xf32, #tpu.memory_space<vmem>>) attributes {dimension_semantics = [#tpu.dimension_semantics<parallel>, #tpu.dimension_semantics<parallel>, #tpu.dimension_semantics<arbitrary>], iteration_bounds = array<i64: 1, 1, 1>, scalar_prefetch = 0 : i64, scratch_operands = 0 : i64, tpu.core_type = #tpu.core_type<tc>, window_params = [{transform_indices = @transform_0, window_bounds = array<i64: 8, 256>}, {transform_indices = @transform_1, window_bounds = array<i64: 8, 256>}, {transform_indices = @transform_2, window_bounds = array<i64: 1, 256>}, {transform_indices = @transform_3, window_bounds = array<i64: 1, 1, 8, 128>}]} {
    %c0_i32 = arith.constant 0 : i32
    %0 = arith.cmpi eq, %arg2, %c0_i32 : i32
    %1 = arith.extui %0 : i1 to i32
    %c0_i32_0 = arith.constant 0 : i32
    %2 = arith.cmpi ne, %1, %c0_i32_0 : i32
    scf.if %2 {
      %cst = arith.constant 0.000000e+00 : f32
      %17 = vector.broadcast %cst : f32 to vector<1x1x8x128xf32>
      %c0_14 = arith.constant 0 : index
      %c0_15 = arith.constant 0 : index
      %c0_16 = arith.constant 0 : index
      %c0_17 = arith.constant 0 : index
      %18 = vector.load %arg6[%c0_14, %c0_15, %c0_16, %c0_17] : memref<1x1x8x128xf32, #tpu.memory_space<vmem>>, vector<1x1x8x128xf32>
      tpu.vector_store %arg6[%c0_14, %c0_15, %c0_16, %c0_17], %17 {strides = array<i32>} : memref<1x1x8x128xf32, #tpu.memory_space<vmem>>, vector<1x1x8x128xf32>,
    } else {
    }
    %c0 = arith.constant 0 : index
    %c0_1 = arith.constant 0 : index
    %3 = vector.load %arg3[%c0, %c0_1] : memref<8x256xf32, #tpu.memory_space<vmem>>, vector<8x256xf32>
    %c0_2 = arith.constant 0 : index
    %c0_3 = arith.constant 0 : index
    %4 = vector.load %arg4[%c0_2, %c0_3] : memref<8x256xf32, #tpu.memory_space<vmem>>, vector<8x256xf32>
    %5 = arith.subf %3, %4 : vector<8x256xf32>
    %6 = math.absf %5 : vector<8x256xf32>
    %c0_4 = arith.constant 0 : index
    %c0_5 = arith.constant 0 : index
    %7 = vector.load %arg5[%c0_4, %c0_5] : memref<1x256xf32, #tpu.memory_space<vmem>>, vector<1x256xf32>
    %8 = vector.broadcast %7 : vector<1x256xf32> to vector<8x256xf32>
    %9 = arith.mulf %6, %8 : vector<8x256xf32>
    %10 = vector.extract_strided_slice %9 {offsets = [0, 0], sizes = [8, 128], strides = [1, 1]} : vector<8x256xf32> to vector<8x128xf32>
    %11 = vector.extract_strided_slice %9 {offsets = [0, 128], sizes = [8, 128], strides = [1, 1]} : vector<8x256xf32> to vector<8x128xf32>
    %12 = arith.addf %10, %11 : vector<8x128xf32>
    %c0_6 = arith.constant 0 : index
    %c0_7 = arith.constant 0 : index
    %c0_8 = arith.constant 0 : index
    %c0_9 = arith.constant 0 : index
    %13 = vector.load %arg6[%c0_6, %c0_7, %c0_8, %c0_9] : memref<1x1x8x128xf32, #tpu.memory_space<vmem>>, vector<1x1x8x128xf32>
    %14 = vector.shape_cast %12 : vector<8x128xf32> to vector<1x1x8x128xf32>
    %15 = arith.addf %13, %14 : vector<1x1x8x128xf32>
    %c0_10 = arith.constant 0 : index
    %c0_11 = arith.constant 0 : index
    %c0_12 = arith.constant 0 : index
    %c0_13 = arith.constant 0 : index
    %16 = vector.load %arg6[%c0_10, %c0_11, %c0_12, %c0_13] : memref<1x1x8x128xf32, #tpu.memory_space<vmem>>, vector<1x1x8x128xf32>
    tpu.vector_store %arg6[%c0_10, %c0_11, %c0_12, %c0_13], %15 {strides = array<i32>} : memref<1x1x8x128xf32, #tpu.memory_space<vmem>>, vector<1x1x8x128xf32>,
    return
  }
  func.func @transform_0(%arg0: i32, %arg1: i32, %arg2: i32) -> (i32, i32) {
    %c1_i32 = arith.constant 1 : i32
    %0 = arith.muli %arg1, %c1_i32 : i32
    %1 = arith.addi %0, %arg2 : i32
    %c0_i32 = arith.constant 0 : i32
    return %arg0, %1 : i32, i32
  }
  func.func @transform_1(%arg0: i32, %arg1: i32, %arg2: i32) -> (i32, i32) {
    %c1_i32 = arith.constant 1 : i32
    %0 = arith.muli %arg1, %c1_i32 : i32
    %1 = arith.addi %0, %arg2 : i32
    %c0_i32 = arith.constant 0 : i32
    return %arg0, %1 : i32, i32
  }
  func.func @transform_2(%arg0: i32, %arg1: i32, %arg2: i32) -> (i32, i32) {
    %c1_i32 = arith.constant 1 : i32
    %0 = arith.muli %arg1, %c1_i32 : i32
    %1 = arith.addi %0, %arg2 : i32
    %c0_i32 = arith.constant 0 : i32
    %c0_i32_0 = arith.constant 0 : i32
    return %c0_i32, %1 : i32, i32
  }
  func.func @transform_3(%arg0: i32, %arg1: i32, %arg2: i32) -> (i32, i32, i32, i32) {
    %c0_i32 = arith.constant 0 : i32
    %c0_i32_0 = arith.constant 0 : i32
    %c0_i32_1 = arith.constant 0 : i32
    return %arg0, %arg1, %c0_i32, %c0_i32_0 : i32, i32, i32, i32
  }
}

</mosaic_0001>

<llo_original>
// kernel: tpu_custom_call.1
$region0: #{tpu_custom_call.1}
  #allocation0 [shape = 'u32[]', space=smem, size = 0x4, offset = 0x4, fixed_abs, tag = 'smem constant byte address 0x4 - core index']
  #allocation1 [shape = 'u32[144,128]{1,0:T(1,128)}', space=vmem, size = 0x12000, scoped, tag = 'internal scratch']
  %s0 = inlined_call_operand.hbm [shape: f32[8,256], index: 0, kind: input, shape index: {}]
  %s1 = inlined_call_operand.hbm [shape: f32[8,256], index: 1, kind: input, shape index: {}]
  %s2 = inlined_call_operand.vmem [shape: f32[1,256], index: 2, kind: input, shape index: {}]
  %s3 = inlined_call_operand.hbm [shape: f32[1,1,8,128], index: 3, kind: output, shape index: {}]
  %s4 = sld [smem:[#allocation0]]
  $region34: #{tpu_custom_call.1} parent=0
    _
  %s6 = ssub.s32 1, %s4
  %s7 = scalar_select 0, %s6, %s4
  $region1: #{tpu_custom_call.1} parent=0
    #allocation2 [shape = 'u8[8192]{0}', space=vmem, size = 0x2000, scoped, tag = 'input window, operand 0, single buffered']
    #allocation3 [shape = 's32[1]{0}', space=sflag, size = 0x4, scoped, tag = 'scoped memory for tpu_custom_call.1']
    #allocation4 [shape = 's32[1]{0}', space=sflag, size = 0x4, scoped, tag = 'scoped memory for tpu_custom_call.1']
    #allocation5 [shape = 'u8[8192]{0}', space=vmem, size = 0x2000, scoped, tag = 'input window, operand 1, single buffered']
    #allocation6 [shape = 's32[1]{0}', space=sflag, size = 0x4, scoped, tag = 'scoped memory for tpu_custom_call.1']
    #allocation7 [shape = 'u8[4096]{0}', space=vmem, size = 0x1000, scoped, tag = 'output window, operand 0, single buffered']
    %8 = vsyncpa [#allocation3], 0
    %9 = vsyncpa [#allocation6], 0
    %10 = vsyncpa [#allocation4], 0
    // Predicated region
    $region2: #{tpu_custom_call.1} parent=1 // pred_check
      _
    $region3: #{tpu_custom_call.1} parent=1 // pred_check_branch
      %12 = sbr.rel (0) target = $region5
    $region4: #{tpu_custom_call.1} parent=1 // pred_region
      %s13 = sadd.s32 0, 0
      %s14 = smul.u32 2, %s13
      %s16 = ssub.s32 256, 256
      %17 = vsyncadd [#allocation3], %s16
      %s18 = smul.addr %s14, 128
      %s19 = scalar_lea.hbm %s0, %s18
      %s21 = sshll.u32 [#allocation2], 4
      %s22 = int_to_ptr.vmem [resolvable:$true] %s21
      %24 = dma.hbm_to_vmem [thread:$0]  %s19, 256, %s22, [#allocation3]
    $region5: #{tpu_custom_call.1} parent=1 // pred_fallthru
      _
    // Predicated region
    $region6: #{tpu_custom_call.1} parent=1 // pred_check
      _
    $region7: #{tpu_custom_call.1} parent=1 // pred_check_branch
      %26 = sbr.rel (0) target = $region9
    $region8: #{tpu_custom_call.1} parent=1 // pred_region
      %s27 = sadd.s32 0, 0
      %s28 = smul.u32 2, %s27
      %s30 = ssub.s32 256, 256
      %31 = vsyncadd [#allocation6], %s30
      %s32 = smul.addr %s28, 128
      %s33 = scalar_lea.hbm %s1, %s32
      %s35 = sshll.u32 [#allocation5], 4
      %s36 = int_to_ptr.vmem [resolvable:$true] %s35
      %38 = dma.hbm_to_vmem [thread:$0]  %s33, 256, %s36, [#allocation6]
    $region9: #{tpu_custom_call.1} parent=1 // pred_fallthru
      _
    // Predicated region
    $region10: #{tpu_custom_call.1} parent=1 // pred_check
      _
    $region11: #{tpu_custom_call.1} parent=1 // pred_check_branch
      %40 = sbr.rel (0) target = $region13
    $region12: #{tpu_custom_call.1} parent=1 // pred_region
      %s41 = sadd.s32 0, 0
      %s42 = smul.u32 2, %s41
      %p43 = scmp.lt.s32.totalorder %s42, 1
      %s44 = scalar_select %p43, %s42, 1
      %s45 = scalar_lea.vmem %s2, %s44
      %s46 = sadd.s32 0, 0
      %s47 = smul.u32 2, %s46
    $region13: #{tpu_custom_call.1} parent=1 // pred_fallthru
      _
    // Predicated region
    $region14: #{tpu_custom_call.1} parent=1 // pred_check
      _
    $region15: #{tpu_custom_call.1} parent=1 // pred_check_branch
      %49 = sbr.rel (0) target = $region17
    $region16: #{tpu_custom_call.1} parent=1 // pred_region
      %50 = dma.done [#allocation3], 256
    $region17: #{tpu_custom_call.1} parent=1 // pred_fallthru
      _
    // Predicated region
    $region18: #{tpu_custom_call.1} parent=1 // pred_check
      _
    $region19: #{tpu_custom_call.1} parent=1 // pred_check_branch
      %52 = sbr.rel (0) target = $region21
    $region20: #{tpu_custom_call.1} parent=1 // pred_region
      %53 = dma.done [#allocation6], 256
    $region21: #{tpu_custom_call.1} parent=1 // pred_fallthru
      _
    %s54 = sadd.s32 0, 0
    %s55 = smul.u32 2, %s54
    %p56 = scmp.lt.s32.totalorder %s55, 1
    %s57 = scalar_select %p56, %s55, 1
    %s58 = scalar_lea.vmem %s2, %s57
    %s59 = sadd.s32 0, 0
    %s60 = smul.u32 2, %s59
    %s61 = sadd.s32 0, 0
    %s62 = smul.u32 2, %s61
    %s63 = sadd.s32 0, 0
    %s64 = smul.u32 2, %s63
    %p65 = scmp.lt.s32.totalorder %s64, 1
    %s66 = scalar_select %p65, %s64, 1
    %s67 = scalar_lea.vmem %s2, %s66
    %s68 = sadd.s32 0, 0
    %s69 = smul.u32 2, %s68
    %p70 = scmp.eq.s32.totalorder 0, 0
    // Predicated region
    $region22: #{tpu_custom_call.1} parent=1 // pred_check
      %p71 = pneg %p70
    $region23: #{tpu_custom_call.1} parent=1 // pred_check_branch
      %73 = sbr.rel (%p71) target = $region25
    $region24: #{tpu_custom_call.1} parent=1 // pred_region
      %74 = vst [vmem:[#allocation7] sm:$0xff] 0.0
    $region25: #{tpu_custom_call.1} parent=1 // pred_fallthru
      _
    %v75 = vld [vmem:[#allocation2] sm:$0xff]
    %v76 = vld [vmem:[#allocation2 + $0x8] sm:$0xff]
    %v77 = vld [vmem:[#allocation5] sm:$0xff]
    %v78 = vld [vmem:[#allocation5 + $0x8] sm:$0xff]
    %v79 = vsub.f32 %v75, %v77
    %v80 = vsub.f32 %v76, %v78
    %v81 = vand.u32 2147483647, %v79
    %v82 = vand.u32 2147483647, %v80
    %v83 = vld [vmem:[%s67] sm:$0x3]
    %v85 = vlaneseq
    %v86 = vshrl.u32 %v85, 7
    %v87 = vsub.s32 0, %v86
    %v88 = vrot.slane %v83, %v87
    %v89 = vlaneseq
    %v90 = vshrl.u32 %v89, 7
    %v91 = vsub.s32 1, %v90
    %v92 = vrot.slane %v83, %v91
    %v95 = vmul.f32 %v81, %v88
    %v96 = vmul.f32 %v82, %v92
    %v97 = vadd.f32 %v95, %v96
    %v98 = vld [vmem:[#allocation7] sm:$0xff]
    %v99 = vadd.f32 %v98, %v97
    %100 = vst [vmem:[#allocation7] sm:$0xff] %v99
    // Predicated region
    $region26: #{tpu_custom_call.1} parent=1 // pred_check
      _
    $region27: #{tpu_custom_call.1} parent=1 // pred_check_branch
      %102 = sbr.rel (0) target = $region29
    $region28: #{tpu_custom_call.1} parent=1 // pred_region
      %s104 = ssub.s32 128, 128
      %105 = vsyncadd [#allocation4], %s104
      %s107 = sshll.u32 [#allocation7], 4
      %s108 = int_to_ptr.vmem [resolvable:$true] %s107
      %110 = dma.vmem_to_hbm [thread:$0]  %s108, 128, %s3, [#allocation4]
    $region29: #{tpu_custom_call.1} parent=1 // pred_fallthru
      _
    // Predicated region
    $region30: #{tpu_custom_call.1} parent=1 // pred_check
      _
    $region31: #{tpu_custom_call.1} parent=1 // pred_check_branch
      %112 = sbr.rel (0) target = $region33
    $region32: #{tpu_custom_call.1} parent=1 // pred_region
      %113 = dma.done [#allocation4], 128
    $region33: #{tpu_custom_call.1} parent=1 // pred_fallthru
      _
    %114 = vsyncpa [#allocation3], 1
    %115 = vsyncpa [#allocation6], 1
    %116 = vsyncpa [#allocation4], 1

</llo_original>
